<compile_context>
chip_gen: v7x
topology: tpu7x:2x2x1
jax: 0.10.0
libtpu: 0.0.40
codegen_flags: <defaults>
</compile_context>

<pallas_src>
import functools

import jax
import jax.numpy as jnp
from jax.experimental import pallas as pl
from jax.experimental.pallas import tpu as pltpu


# ----------------------------- kernels --------------------------------------


def _epilogue(acc_f32, bias_row, activation):
    acc = acc_f32 + bias_row.astype(jnp.float32)          # (1, tn) broadcast
    if activation == "relu":
        acc = jnp.maximum(acc, 0.0)
    elif activation == "leaky_relu":
        acc = jnp.where(acc >= 0.0, acc, 0.01 * acc)      # PyTorch default slope
    return acc


def _slimfc_kernel_single_k(x_ref, w_ref, b_ref, o_ref, *, activation):
    # Whole K fits in one tile: no scratch accumulator, no pl.when branches.
    acc = jnp.dot(x_ref[...], w_ref[...], preferred_element_type=jnp.float32)
    o_ref[...] = _epilogue(acc, b_ref[...], activation).astype(o_ref.dtype)


def _slimfc_kernel_acc(x_ref, w_ref, b_ref, o_ref, acc_ref, *, activation):
    # NOTE: correctness requires K to be the innermost grid axis and marked
    # "arbitrary": the output block index is constant across it, so the f32
    # VMEM accumulator carries partial sums between K steps.
    k = pl.program_id(2)

    @pl.when(k == 0)
    def _():
        acc_ref[...] = jnp.zeros_like(acc_ref)

    acc_ref[...] += jnp.dot(
        x_ref[...], w_ref[...], preferred_element_type=jnp.float32
    )

    @pl.when(k == pl.num_programs(2) - 1)
    def _():
        o_ref[...] = _epilogue(acc_ref[...], b_ref[...], activation).astype(
            o_ref.dtype
        )


# ----------------------------- helpers ---------------------------------------


def _round_up(a, b):
    return (a + b - 1) // b * b


def _hw_config():
    """(physical VMEM bytes, tensorcores/chip, min tn/tk tile for the MXU)."""
    vmem = None
    try:
        info = pltpu.get_tpu_info()
        vmem = int(getattr(info, "vmem_capacity_bytes", 0)) or None
    except Exception:
        vmem = None
    kind = ""
    try:
        kind = (getattr(jax.devices()[0], "device_kind", "") or "").lower()
    except Exception:
        pass
    is_v7 = "v7" in kind
    is_v5 = "v5" in kind
    if vmem is None:
        vmem = (64 if is_v7 else 128) * 1024 * 1024
    num_tc = 2 if is_v7 else 1
    min_nk = 128 if is_v5 else 256          # v5e MXU is 4x128; v6e/v7x are 2x256
    return vmem, num_tc, min_nk


def _vmem_footprint(tm, tn, tk, in_bytes, out_bytes, single_k):
    fp = 2 * (tm * tk + tk * tn) * in_bytes     # double-buffered x / W tiles
    fp += 2 * tn * 4                            # double-buffered bias row (f32)
    fp += 2 * tm * tn * out_bytes               # double-buffered output tile
    if not single_k:
        fp += tm * tn * 4                       # f32 scratch accumulator
    return fp


# ----------------------------- module ----------------------------------------


class SlimFC:
    """Pallas-TPU port of the PyTorch SlimFC:  y = activation(x @ W.T + b)."""

    def __init__(self, in_size, out_size, initializer, activation=None,
                 Norm="None", *, bias=None, compute_dtype="auto",
                 tn=None, tk=None):
        if Norm != "None":
            # TODO(synk): SpectralNorm / BatchNorm branches of __init__ are not
            # implemented (default Norm='None' path only).
            raise NotImplementedError("Norm=%r not supported" % (Norm,))

        self.in_size = int(in_size)
        self.out_size = int(out_size)
        self.activation = activation

        weight = jnp.asarray(initializer(out_size, in_size))    # [out, in]
        assert weight.shape == (out_size, in_size)
        if bias is None:
            bias = jnp.zeros((out_size,), jnp.float32)           # constant_(b, 0)
        bias = jnp.asarray(bias, jnp.float32)

        self._vmem_phys, self._num_tc, self._min_nk = _hw_config()
        # ~96 MiB usable on v5e/v6e (128 MiB physical), ~48 MiB on v7x (64 MiB).
        self._budget = (self._vmem_phys * 3) // 4

        if compute_dtype == "auto":
            # bf16-native MXU on v6e/v7x + halved weight HBM stream everywhere;
            # accumulation stays f32 via preferred_element_type.
            compute_dtype = jnp.bfloat16
        self.compute_dtype = compute_dtype

        w = weight if compute_dtype is None else weight.astype(compute_dtype)
        in_bytes = jnp.dtype(w.dtype).itemsize
        out_bytes = 4   # assume f32 activations for budgeting

        # -------- tile selection along the weight dims (one-time) ------------
        n128 = _round_up(out_size, 128)
        k128 = _round_up(in_size, 128)
        if tn is None:
            tn = min(n128, 512)                 # lane-dense output store
        else:
            tn = min(_round_up(tn, 128), n128)
        if tk is None:
            tk = k128                           # full K -> single-K fast path
        else:
            tk = min(_round_up(tk, 128), k128)
        tn_floor = min(tn, self._min_nk)
        tk_floor = min(tk, self._min_nk)

        def _fits(tm_assume, tn_, tk_):
            return _vmem_footprint(tm_assume, tn_, tk_, in_bytes, out_bytes,
                                   tk_ >= k128) <= self._budget

        # shrink priority: tk first (tm handled per call), tn last.
        while not _fits(256, tn, tk) and tk > tk_floor:
            tk = max(tk_floor, _round_up(tk // 2, 128))
        while not _fits(8, tn, tk) and tn > tn_floor:
            tn = max(tn_floor, _round_up(tn // 2, 128))

        self.tn, self.tk = tn, tk
        self.Np = _round_up(out_size, tn)
        self.Kp = _round_up(in_size, tk)
        self._in_bytes = in_bytes

        # -------- one-time weight / bias prep (no per-call pad / astype) -----
        w_t = w.T                                                # [in, out]
        self.weight_t = jnp.pad(
            w_t, ((0, self.Kp - in_size), (0, self.Np - out_size)))
        self.bias2d = jnp.pad(bias, (0, self.Np - out_size)).reshape(1, self.Np)

    def __call__(self, x, *, tm=None):
        M, K = x.shape
        assert K == self.in_size, "x / weight inner dims mismatch"
        out_dtype = x.dtype
        if self.compute_dtype is not None:
            x = x.astype(self.compute_dtype)

        tn, tk = self.tn, self.tk
        Np, Kp = self.Np, self.Kp
        in_bytes = self._in_bytes
        out_bytes = jnp.dtype(out_dtype).itemsize
        single_k = (Kp == tk)

        # -------- tm selection: minimal M padding, <= 256 ---------------------
        m8 = _round_up(M, 8)
        if tm is None:
            if m8 <= 256:
                tm = m8
            else:
                n_m_tiles = -(-m8 // 256)
                tm = _round_up(-(-M // n_m_tiles), 8)
        else:
            tm = _round_up(tm, 8)
        while (_vmem_footprint(tm, tn, tk, in_bytes, out_bytes, single_k)
               > self._budget) and tm > 8:
            tm = max(8, _round_up(tm // 2, 8))
        Mp = _round_up(M, tm)

        # -------- v7x: guarantee >= 2 parallel grid points (2 TCs) ------------
        if self._num_tc >= 2 and (Mp // tm) * (Np // tn) < 2:
            if m8 > 8:                          # split M first (keeps tn wide)
                tm = _round_up(-(-M // 2), 8)
                Mp = _round_up(M, tm)
            if ((Mp // tm) * (Np // tn) < 2 and tn >= 256
                    and (tn // 2) % 128 == 0 and Np % (tn // 2) == 0):
                tn = tn // 2                    # last resort: narrower N tile

        # -------- pad x (cheap: x is the small operand) ------------------------
        if (Mp, Kp) != (M, K):
            x = jnp.pad(x, ((0, Mp - M), (0, Kp - K)))

        vmem_limit = int(min(
            self._vmem_phys,
            max(_vmem_footprint(tm, tn, tk, in_bytes, out_bytes, single_k)
                + 8 * 1024 * 1024, 32 * 1024 * 1024)))

        cost = pl.CostEstimate(
            flops=2 * Mp * Np * Kp,
            transcendentals=0,
            bytes_accessed=(Mp * Kp * in_bytes + Kp * Np * in_bytes
                            + Np * 4 + Mp * Np * out_bytes),
        )

        if single_k:
            kernel = functools.partial(_slimfc_kernel_single_k,
                                       activation=self.activation)
            grid = (Mp // tm, Np // tn)
            grid_spec = pltpu.PrefetchScalarGridSpec(
                num_scalar_prefetch=0,
                grid=grid,
                in_specs=[
                    pl.BlockSpec((tm, tk), lambda i, j: (i, 0)),
                    pl.BlockSpec((tk, tn), lambda i, j: (0, j)),
                    pl.BlockSpec((1, tn), lambda i, j: (0, j)),
                ],
                out_specs=pl.BlockSpec((tm, tn), lambda i, j: (i, j)),
                scratch_shapes=[],
            )
            dims = ("parallel", "parallel")
        else:
            kernel = functools.partial(_slimfc_kernel_acc,
                                       activation=self.activation)
            # K must remain the innermost, "arbitrary" grid axis (accumulator).
            grid = (Mp // tm, Np // tn, Kp // tk)
            grid_spec = pltpu.PrefetchScalarGridSpec(
                num_scalar_prefetch=0,
                grid=grid,
                in_specs=[
                    pl.BlockSpec((tm, tk), lambda i, j, k: (i, k)),
                    pl.BlockSpec((tk, tn), lambda i, j, k: (k, j)),
                    pl.BlockSpec((1, tn), lambda i, j, k: (0, j)),
                ],
                out_specs=pl.BlockSpec((tm, tn), lambda i, j, k: (i, j)),
                scratch_shapes=[pltpu.VMEM((tm, tn), jnp.float32)],
            )
            dims = ("parallel", "parallel", "arbitrary")

        out = pl.pallas_call(
            kernel,
            out_shape=jax.ShapeDtypeStruct((Mp, Np), out_dtype),
            grid_spec=grid_spec,
            compiler_params=pltpu.CompilerParams(
                dimension_semantics=dims,
                vmem_limit_bytes=vmem_limit,
            ),
            cost_estimate=cost,
        )(x, self.weight_t, self.bias2d)

        return out[:M, :self.out_size]


# ----------------------------- reference / tests ------------------------------


def _xavier_uniform(key, out_size, in_size):
    # Deterministic stand-in for the `initializer(linear.weight)` callable.
    limit = jnp.sqrt(6.0 / (in_size + out_size))
    return jax.random.uniform(
        key, (out_size, in_size), jnp.float32, minval=-limit, maxval=limit
    )


def _ref(x, weight, bias, activation):
    y = x.astype(jnp.float32) @ weight.astype(jnp.float32).T + bias
    if activation == "relu":
        y = jnp.maximum(y, 0.0)
    elif activation == "leaky_relu":
        y = jnp.where(y >= 0.0, y, 0.01 * y)
    return y


if __name__ == "__main__":
    key = jax.random.PRNGKey(0)
    k_w1, k_x1, k_w2, k_x2, k_b2 = jax.random.split(key, 5)

    # --- test 1: small FC, relu, f32 compute, single-K fast path --------------
    batch, in_size, out_size = 8, 32, 64
    init1 = lambda o, i: _xavier_uniform(k_w1, o, i)
    fc1 = SlimFC(in_size, out_size, init1, activation="relu",
                 compute_dtype=jnp.float32)
    x1 = jax.random.normal(k_x1, (batch, in_size), jnp.float32)
    y1 = fc1(x1)
    jax.block_until_ready(y1)
    w1 = init1(out_size, in_size)
    assert jnp.allclose(y1, _ref(x1, w1, jnp.zeros((out_size,)), "relu"),
                        atol=1e-5, rtol=1e-5), "relu/f32 mismatch vs reference"

    # --- test 2: ragged dims, multi-step K accumulator, leaky_relu, nonzero b -
    b2, i2, o2 = 10, 300, 200
    init2 = lambda o, i: _xavier_uniform(k_w2, o, i)
    bias2 = 0.1 * jax.random.normal(k_b2, (o2,), jnp.float32)
    fc2 = SlimFC(i2, o2, init2, activation="leaky_relu", bias=bias2,
                 compute_dtype=jnp.float32, tk=128, tn=128)
    x2 = jax.random.normal(k_x2, (b2, i2), jnp.float32)
    y2 = fc2(x2)
    jax.block_until_ready(y2)
    w2 = init2(o2, i2)
    assert jnp.allclose(y2, _ref(x2, w2, bias2, "leaky_relu"),
                        atol=1e-4, rtol=1e-4), "leaky_relu mismatch vs reference"

    # --- test 3: default bf16 compute path (f32 accumulation), loose tol ------
    fc3 = SlimFC(in_size, out_size, init1, activation="relu")   # 'auto' -> bf16
    y3 = fc3(x1)
    jax.block_until_ready(y3)
    assert jnp.allclose(y3, _ref(x1, w1, jnp.zeros((out_size,)), "relu"),
                        atol=1e-1, rtol=1e-1), "bf16 mismatch vs reference"

    print("KERNEL_OK")
</pallas_src>

<mosaic_0001>
module attributes {stable_mosaic.version = 11 : i64} {
  func.func @_slimfc_kernel_single_k(%arg0: i32, %arg1: i32, %arg2: memref<8x128xf32, #tpu.memory_space<vmem>>, %arg3: memref<128x128xf32, #tpu.memory_space<vmem>>, %arg4: memref<1x128xf32, #tpu.memory_space<vmem>>, %arg5: memref<8x128xf32, #tpu.memory_space<vmem>>) attributes {dimension_semantics = [#tpu.dimension_semantics<parallel>, #tpu.dimension_semantics<parallel>], iteration_bounds = array<i64: 1, 1>, scalar_prefetch = 0 : i64, scratch_operands = 0 : i64, tpu.core_type = #tpu.core_type<tc>, window_params = [{transform_indices = @transform_0, window_bounds = array<i64: 8, 128>}, {transform_indices = @transform_1, window_bounds = array<i64: 128, 128>}, {transform_indices = @transform_2, window_bounds = array<i64: 1, 128>}, {transform_indices = @transform_3, window_bounds = array<i64: 8, 128>}]} {
    %c0 = arith.constant 0 : index
    %c0_0 = arith.constant 0 : index
    %0 = vector.load %arg2[%c0, %c0_0] : memref<8x128xf32, #tpu.memory_space<vmem>>, vector<8x128xf32>
    %c0_1 = arith.constant 0 : index
    %c0_2 = arith.constant 0 : index
    %1 = vector.load %arg3[%c0_1, %c0_2] : memref<128x128xf32, #tpu.memory_space<vmem>>, vector<128x128xf32>
    %cst = arith.constant dense<0.000000e+00> : vector<8x128xf32>
    %2 = tpu.matmul %0, %1, %cst {dimension_numbers = #tpu.dot_dimension_numbers<[1], [0], [0], [1], [0, 0, 1, 1], [], []>} : vector<8x128xf32>, vector<128x128xf32>, vector<8x128xf32> -> vector<8x128xf32>
    %c0_3 = arith.constant 0 : index
    %c0_4 = arith.constant 0 : index
    %3 = vector.load %arg4[%c0_3, %c0_4] : memref<1x128xf32, #tpu.memory_space<vmem>>, vector<1x128xf32>
    %4 = vector.broadcast %3 : vector<1x128xf32> to vector<8x128xf32>
    %5 = arith.addf %2, %4 : vector<8x128xf32>
    %cst_5 = arith.constant 0.000000e+00 : f32
    %6 = vector.broadcast %cst_5 : f32 to vector<8x128xf32>
    %7 = arith.maximumf %5, %6 : vector<8x128xf32>
    %c0_6 = arith.constant 0 : index
    %c0_7 = arith.constant 0 : index
    %8 = vector.load %arg5[%c0_6, %c0_7] : memref<8x128xf32, #tpu.memory_space<vmem>>, vector<8x128xf32>
    tpu.vector_store %arg5[%c0_6, %c0_7], %7 {strides = array<i32>} : memref<8x128xf32, #tpu.memory_space<vmem>>, vector<8x128xf32>,
    return
  }
  func.func @transform_0(%arg0: i32, %arg1: i32) -> (i32, i32) {
    %c0_i32 = arith.constant 0 : i32
    %c0_i32_0 = arith.constant 0 : i32
    return %arg0, %c0_i32 : i32, i32
  }
  func.func @transform_1(%arg0: i32, %arg1: i32) -> (i32, i32) {
    %c0_i32 = arith.constant 0 : i32
    %c0_i32_0 = arith.constant 0 : i32
    return %c0_i32, %arg1 : i32, i32
  }
  func.func @transform_2(%arg0: i32, %arg1: i32) -> (i32, i32) {
    %c0_i32 = arith.constant 0 : i32
    %c0_i32_0 = arith.constant 0 : i32
    return %c0_i32, %arg1 : i32, i32
  }
  func.func @transform_3(%arg0: i32, %arg1: i32) -> (i32, i32) {
    %c0_i32 = arith.constant 0 : i32
    return %arg0, %arg1 : i32, i32
  }
}

</mosaic_0001>

<llo_original>
// kernel: tpu_custom_call.1
$region0: #{tpu_custom_call.1}
  #allocation0 [shape = 'u32[]', space=smem, size = 0x4, offset = 0x4, fixed_abs, tag = 'smem constant byte address 0x4 - core index']
  #allocation1 [shape = 'u32[144,128]{1,0:T(1,128)}', space=vmem, size = 0x12000, scoped, tag = 'internal scratch']
  %s0 = inlined_call_operand.hbm [shape: f32[8,128], index: 0, kind: input, shape index: {}]
  %s1 = inlined_call_operand.hbm [shape: f32[128,128], index: 1, kind: input, shape index: {}]
  %s2 = inlined_call_operand.vmem [shape: f32[1,128], index: 2, kind: input, shape index: {}]
  %s3 = inlined_call_operand.hbm [shape: f32[8,128], index: 3, kind: output, shape index: {}]
  %s4 = sld [smem:[#allocation0]]
  $region30: #{tpu_custom_call.1} parent=0
    _
  %s6 = ssub.s32 1, %s4
  %s7 = scalar_select 0, %s6, %s4
  $region1: #{tpu_custom_call.1} parent=0
    #allocation2 [shape = 'u8[4096]{0}', space=vmem, size = 0x1000, scoped, tag = 'input window, operand 0, single buffered']
    #allocation3 [shape = 's32[1]{0}', space=sflag, size = 0x4, scoped, tag = 'scoped memory for tpu_custom_call.1']
    #allocation4 [shape = 's32[1]{0}', space=sflag, size = 0x4, scoped, tag = 'scoped memory for tpu_custom_call.1']
    #allocation5 [shape = 'u8[65536]{0}', space=vmem, size = 0x10000, scoped, tag = 'input window, operand 1, single buffered']
    #allocation6 [shape = 's32[1]{0}', space=sflag, size = 0x4, scoped, tag = 'scoped memory for tpu_custom_call.1']
    #allocation7 [shape = 'u8[4096]{0}', space=vmem, size = 0x1000, scoped, tag = 'output window, operand 0, single buffered']
    %8 = vsyncpa [#allocation3], 0
    %9 = vsyncpa [#allocation6], 0
    %10 = vsyncpa [#allocation4], 0
    // Predicated region
    $region2: #{tpu_custom_call.1} parent=1 // pred_check
      _
    $region3: #{tpu_custom_call.1} parent=1 // pred_check_branch
      %12 = sbr.rel (0) target = $region5
    $region4: #{tpu_custom_call.1} parent=1 // pred_region
      %s14 = ssub.s32 128, 128
      %15 = vsyncadd [#allocation3], %s14
      %s17 = sshll.u32 [#allocation2], 4
      %s18 = int_to_ptr.vmem [resolvable:$true] %s17
      %20 = dma.hbm_to_vmem [thread:$0]  %s0, 128, %s18, [#allocation3]
    $region5: #{tpu_custom_call.1} parent=1 // pred_fallthru
      _
    // Predicated region
    $region6: #{tpu_custom_call.1} parent=1 // pred_check
      _
    $region7: #{tpu_custom_call.1} parent=1 // pred_check_branch
      %22 = sbr.rel (0) target = $region9
    $region8: #{tpu_custom_call.1} parent=1 // pred_region
      %s24 = ssub.s32 2048, 2048
      %25 = vsyncadd [#allocation6], %s24
      %s26 = sshll.u32 [#allocation5], 4
      %s27 = int_to_ptr.vmem [resolvable:$true] %s26
      %32 = dma.hbm_to_vmem [thread:$0]  %s1, 2048, %s27, [#allocation6], 128, 128, 8
    $region9: #{tpu_custom_call.1} parent=1 // pred_fallthru
      _
    // Predicated region
    $region10: #{tpu_custom_call.1} parent=1 // pred_check
      _
    $region11: #{tpu_custom_call.1} parent=1 // pred_check_branch
      %34 = sbr.rel (0) target = $region13
    $region12: #{tpu_custom_call.1} parent=1 // pred_region
      _
    $region13: #{tpu_custom_call.1} parent=1 // pred_fallthru
      _
    // Predicated region
    $region14: #{tpu_custom_call.1} parent=1 // pred_check
      _
    $region15: #{tpu_custom_call.1} parent=1 // pred_check_branch
      %36 = sbr.rel (0) target = $region17
    $region16: #{tpu_custom_call.1} parent=1 // pred_region
      %37 = dma.done [#allocation3], 128
    $region17: #{tpu_custom_call.1} parent=1 // pred_fallthru
      _
    // Predicated region
    $region18: #{tpu_custom_call.1} parent=1 // pred_check
      _
    $region19: #{tpu_custom_call.1} parent=1 // pred_check_branch
      %39 = sbr.rel (0) target = $region21
    $region20: #{tpu_custom_call.1} parent=1 // pred_region
      %40 = dma.done [#allocation6], 2048
    $region21: #{tpu_custom_call.1} parent=1 // pred_fallthru
      _
    %v41 = vld [vmem:[#allocation2] sm:$0xff]
    %v42 = vld [vmem:[#allocation5] sm:$0xff]
    %v43 = vld [vmem:[#allocation5 + $0x8] sm:$0xff]
    %v44 = vld [vmem:[#allocation5 + $0x10] sm:$0xff]
    %v45 = vld [vmem:[#allocation5 + $0x18] sm:$0xff]
    %v46 = vld [vmem:[#allocation5 + $0x20] sm:$0xff]
    %v47 = vld [vmem:[#allocation5 + $0x28] sm:$0xff]
    %v48 = vld [vmem:[#allocation5 + $0x30] sm:$0xff]
    %v49 = vld [vmem:[#allocation5 + $0x38] sm:$0xff]
    %v50 = vld [vmem:[#allocation5 + $0x40] sm:$0xff]
    %v51 = vld [vmem:[#allocation5 + $0x48] sm:$0xff]
    %v52 = vld [vmem:[#allocation5 + $0x50] sm:$0xff]
    %v53 = vld [vmem:[#allocation5 + $0x58] sm:$0xff]
    %v54 = vld [vmem:[#allocation5 + $0x60] sm:$0xff]
    %v55 = vld [vmem:[#allocation5 + $0x68] sm:$0xff]
    %v56 = vld [vmem:[#allocation5 + $0x70] sm:$0xff]
    %v57 = vld [vmem:[#allocation5 + $0x78] sm:$0xff]
    %v58 = vld [vmem:[%s2] sm:$0x1]
    %v60 = vlaneseq
    %v61 = vshrl.u32 %v60, 7
    %v62 = vsub.s32 0, %v61
    %v63 = vrot.slane %v58, %v62
    %65 = vmatprep.subr.mxu0 0.0
    %66 = vmatpush1.msra.mxu0 %v42
    %67 = vmatprep.subr.mxu0 0.0
    %68 = vmatpush1.msra.mxu0 %v43
    %69 = vmatprep.subr.mxu0 0.0
    %70 = vmatpush1.msra.mxu0 %v44
    %71 = vmatprep.subr.mxu0 0.0
    %72 = vmatpush1.msra.mxu0 %v45
    %73 = vmatprep.subr.mxu0 0.0
    %74 = vmatpush1.msra.mxu0 %v46
    %75 = vmatprep.subr.mxu0 0.0
    %76 = vmatpush1.msra.mxu0 %v47
    %77 = vmatprep.subr.mxu0 0.0
    %78 = vmatpush1.msra.mxu0 %v48
    %79 = vmatprep.subr.mxu0 0.0
    %80 = vmatpush1.msra.mxu0 %v49
    %81 = vmatprep.subr.mxu0 0.0
    %82 = vmatpush1.msra.mxu0 %v50
    %83 = vmatprep.subr.mxu0 0.0
    %84 = vmatpush1.msra.mxu0 %v51
    %85 = vmatprep.subr.mxu0 0.0
    %86 = vmatpush1.msra.mxu0 %v52
    %87 = vmatprep.subr.mxu0 0.0
    %88 = vmatpush1.msra.mxu0 %v53
    %89 = vmatprep.subr.mxu0 0.0
    %90 = vmatpush1.msra.mxu0 %v54
    %91 = vmatprep.subr.mxu0 0.0
    %92 = vmatpush1.msra.mxu0 %v55
    %93 = vmatprep.subr.mxu0 0.0
    %94 = vmatpush1.msra.mxu0 %v56
    %95 = vmatprep.subr.mxu0 0.0
    %96 = vmatpush1.msra.mxu0 %v57
    %97 = vmatprep.subr.mxu0 0.0
    %98 = vmatpush1.msra.mxu0 0.0
    %99 = vmatprep.subr.mxu0 0.0
    %100 = vmatpush1.msra.mxu0 0.0
    %101 = vmatprep.subr.mxu0 0.0
    %102 = vmatpush1.msra.mxu0 0.0
    %103 = vmatprep.subr.mxu0 0.0
    %104 = vmatpush1.msra.mxu0 0.0
    %105 = vmatprep.subr.mxu0 0.0
    %106 = vmatpush1.msra.mxu0 0.0
    %107 = vmatprep.subr.mxu0 0.0
    %108 = vmatpush1.msra.mxu0 0.0
    %109 = vmatprep.subr.mxu0 0.0
    %110 = vmatpush1.msra.mxu0 0.0
    %111 = vmatprep.subr.mxu0 0.0
    %112 = vmatpush1.msra.mxu0 0.0
    %113 = vmatprep.subr.mxu0 0.0
    %114 = vmatpush1.msra.mxu0 0.0
    %115 = vmatprep.subr.mxu0 0.0
    %116 = vmatpush1.msra.mxu0 0.0
    %117 = vmatprep.subr.mxu0 0.0
    %118 = vmatpush1.msra.mxu0 0.0
    %119 = vmatprep.subr.mxu0 0.0
    %120 = vmatpush1.msra.mxu0 0.0
    %121 = vmatprep.subr.mxu0 0.0
    %122 = vmatpush1.msra.mxu0 0.0
    %123 = vmatprep.subr.mxu0 0.0
    %124 = vmatpush1.msra.mxu0 0.0
    %125 = vmatprep.subr.mxu0 0.0
    %126 = vmatpush1.msra.mxu0 0.0
    %127 = vmatprep.subr.mxu0 0.0
    %128 = vmatpush1.msra.mxu0 0.0
    %129 = vmatprep.mubr.f32.mxu0 0.0
    %130 = vmatmul.mubr.f32.gmra.mrb[0].mxu0 %v41
    %v131 = vpop.f32.mrb[0].mxu0
    %v132 = vadd.f32 %v63, %v131
    %v133 = vpop.f32.mrb[0].mxu0
    %134 = vdwg.mxu0
    %v135 = vmax.f32 %v132, 0.0
    %136 = vst [vmem:[#allocation7] sm:$0xff] %v135
    // Predicated region
    $region22: #{tpu_custom_call.1} parent=1 // pred_check
      _
    $region23: #{tpu_custom_call.1} parent=1 // pred_check_branch
      %138 = sbr.rel (0) target = $region25
    $region24: #{tpu_custom_call.1} parent=1 // pred_region
      %s140 = ssub.s32 128, 128
      %141 = vsyncadd [#allocation4], %s140
      %s143 = sshll.u32 [#allocation7], 4
      %s144 = int_to_ptr.vmem [resolvable:$true] %s143
      %146 = dma.vmem_to_hbm [thread:$0]  %s144, 128, %s3, [#allocation4]
    $region25: #{tpu_custom_call.1} parent=1 // pred_fallthru
      _
    // Predicated region
    $region26: #{tpu_custom_call.1} parent=1 // pred_check
      _
    $region27: #{tpu_custom_call.1} parent=1 // pred_check_branch
      %148 = sbr.rel (0) target = $region29
    $region28: #{tpu_custom_call.1} parent=1 // pred_region
      %149 = dma.done [#allocation4], 128
    $region29: #{tpu_custom_call.1} parent=1 // pred_fallthru
      _
    %150 = vsyncpa [#allocation3], 1
    %151 = vsyncpa [#allocation6], 1
    %152 = vsyncpa [#allocation4], 1

</llo_original>
